<compile_context>
chip_gen: v7x
topology: tpu7x:2x2x1
jax: 0.10.0
libtpu: 0.0.40
codegen_flags: <defaults>
</compile_context>

<pallas_src>
import functools

import jax
import jax.numpy as jnp
from jax.experimental import pallas as pl
from jax.experimental.pallas import tpu as pltpu

_BN_EPS = 1e-5
_VMEM_LIMIT = 48 * 1024 * 1024  # <= 64 MiB physical on v7x, << 128 MiB v5e/v6e


def _pick_tile(n, target, quantum):
    """Largest multiple of `quantum` <= target that divides n; fallback n."""
    if n <= target:
        return n
    t = (target // quantum) * quantum
    while t >= quantum:
        if n % t == 0:
            return t
        t -= quantum
    return n  # fallback: whole axis as one block


def _cparams(sem=None):
    if sem is None:
        return pltpu.CompilerParams(vmem_limit_bytes=_VMEM_LIMIT)
    return pltpu.CompilerParams(dimension_semantics=sem,
                                vmem_limit_bytes=_VMEM_LIMIT)


def _vmem_specs(n):
    return [pl.BlockSpec(memory_space=pltpu.MemorySpace.VMEM) for _ in range(n)]


# --------------------------------------------------------------------------
# Kernel 1: tiled aggregation matmul  H = A_hat(bf16) @ F(bf16) -> f32
# --------------------------------------------------------------------------
def _spmm_kernel(a_ref, b_ref, o_ref, acc_ref):
    @pl.when(pl.program_id(1) == 0)
    def _():
        acc_ref[...] = jnp.zeros_like(acc_ref)

    acc_ref[...] += jnp.dot(a_ref[...], b_ref[...],
                            preferred_element_type=jnp.float32)

    @pl.when(pl.program_id(1) == pl.num_programs(1) - 1)
    def _():
        o_ref[...] = acc_ref[...]


def spmm(adj_bf16, feat):
    """H = A_hat @ feat. A_hat is bf16; feat is cast to bf16; f32 accumulate."""
    n = adj_bf16.shape[0]
    c = feat.shape[1]
    tm = _pick_tile(n, 256, 8)     # conservative: fits v5e/v6e/v7x VMEM easily
    tk = _pick_tile(n, 1024, 128)
    feat_bf = feat.astype(jnp.bfloat16)
    cost = pl.CostEstimate(flops=2 * n * n * c,
                           transcendentals=0,
                           bytes_accessed=n * n * 2 + n * c * 2 + n * c * 4)
    return pl.pallas_call(
        _spmm_kernel,
        out_shape=jax.ShapeDtypeStruct((n, c), jnp.float32),
        grid_spec=pltpu.PrefetchScalarGridSpec(
            num_scalar_prefetch=0,
            grid=(n // tm, n // tk),
            in_specs=[pl.BlockSpec((tm, tk), lambda i, k: (i, k)),
                      pl.BlockSpec((tk, c), lambda i, k: (k, 0))],
            out_specs=pl.BlockSpec((tm, c), lambda i, k: (i, 0)),
            scratch_shapes=[pltpu.VMEM((tm, c), jnp.float32)]),
        compiler_params=_cparams(("parallel", "arbitrary")),
        cost_estimate=cost,
    )(adj_bf16, feat_bf)


# --------------------------------------------------------------------------
# Kernel 2: row-tiled feature projection  Y = X @ W
# --------------------------------------------------------------------------
def _project_kernel(x_ref, w_ref, o_ref):
    o_ref[...] = jnp.dot(x_ref[...], w_ref[...],
                         preferred_element_type=jnp.float32).astype(o_ref.dtype)


def project(x, w, out_dtype=jnp.float32):
    n, cin = x.shape
    cout = w.shape[1]
    tm = _pick_tile(n, 512, 8)
    return pl.pallas_call(
        _project_kernel,
        out_shape=jax.ShapeDtypeStruct((n, cout), out_dtype),
        grid_spec=pltpu.PrefetchScalarGridSpec(
            num_scalar_prefetch=0,
            grid=(n // tm,),
            in_specs=[pl.BlockSpec((tm, cin), lambda i: (i, 0)),
                      pl.BlockSpec((cin, cout), lambda i: (0, 0))],
            out_specs=pl.BlockSpec((tm, cout), lambda i: (i, 0))),
        compiler_params=_cparams(("parallel",)),
    )(x, w)


# --------------------------------------------------------------------------
# Kernel 3: BatchNorm phase 1 — per-column sum / sum-of-squares (tiled rows)
# --------------------------------------------------------------------------
def _colstats_kernel(h_ref, sum_ref, sq_ref):
    @pl.when(pl.program_id(0) == 0)
    def _():
        sum_ref[...] = jnp.zeros_like(sum_ref)
        sq_ref[...] = jnp.zeros_like(sq_ref)

    h = h_ref[...]
    sum_ref[...] += jnp.sum(h, axis=0, keepdims=True)
    sq_ref[...] += jnp.sum(h * h, axis=0, keepdims=True)


def column_stats(h):
    n, c = h.shape
    tm = _pick_tile(n, 1024, 8)
    return pl.pallas_call(
        _colstats_kernel,
        out_shape=(jax.ShapeDtypeStruct((1, c), jnp.float32),
                   jax.ShapeDtypeStruct((1, c), jnp.float32)),
        grid_spec=pltpu.PrefetchScalarGridSpec(
            num_scalar_prefetch=0,
            grid=(n // tm,),
            in_specs=[pl.BlockSpec((tm, c), lambda i: (i, 0))],
            out_specs=(pl.BlockSpec((1, c), lambda i: (0, 0)),
                       pl.BlockSpec((1, c), lambda i: (0, 0)))),
        compiler_params=_cparams(("arbitrary",)),   # accumulates across tiles
    )(h)


# --------------------------------------------------------------------------
# Kernel 4: BatchNorm phase 2 + ReLU (tiled rows, training-mode batch stats)
# --------------------------------------------------------------------------
def _bn_relu_kernel(h_ref, sum_ref, sq_ref, gamma_ref, beta_ref, o_ref, *, inv_n):
    mean = sum_ref[...] * inv_n
    var = jnp.maximum(sq_ref[...] * inv_n - mean * mean, 0.0)   # biased var
    scale = gamma_ref[...] * jax.lax.rsqrt(var + _BN_EPS)
    shift = beta_ref[...] - mean * scale
    o_ref[...] = jnp.maximum(h_ref[...] * scale + shift, 0.0)


def bn_relu(h, col_sum, col_sq, gamma, beta):
    n, c = h.shape
    tm = _pick_tile(n, 1024, 8)
    kern = functools.partial(_bn_relu_kernel, inv_n=1.0 / n)
    return pl.pallas_call(
        kern,
        out_shape=jax.ShapeDtypeStruct((n, c), jnp.float32),
        grid_spec=pltpu.PrefetchScalarGridSpec(
            num_scalar_prefetch=0,
            grid=(n // tm,),
            in_specs=[pl.BlockSpec((tm, c), lambda i: (i, 0)),
                      pl.BlockSpec((1, c), lambda i: (0, 0)),
                      pl.BlockSpec((1, c), lambda i: (0, 0)),
                      pl.BlockSpec((1, c), lambda i: (0, 0)),
                      pl.BlockSpec((1, c), lambda i: (0, 0))],
            out_specs=pl.BlockSpec((tm, c), lambda i: (i, 0))),
        compiler_params=_cparams(("parallel",)),
    )(h, col_sum, col_sq, gamma.reshape(1, -1), beta.reshape(1, -1))


def gcn_bn_relu_layer(adj_bf16, x, w, gamma, beta):
    """One layer: ReLU(BatchNorm1d(A_hat @ X @ W)). Conv bias is dropped —
    BatchNorm's mean subtraction cancels it exactly."""
    cin, cout = w.shape
    if cin <= cout:
        # aggregate first: the N^2 matmul has width C_in (the smaller one)
        h = project(spmm(adj_bf16, x), w)
    else:
        # project first: the N^2 matmul has width C_out (the smaller one)
        h = spmm(adj_bf16, project(x, w, out_dtype=jnp.bfloat16))
    s, sq = column_stats(h)
    return bn_relu(h, s, sq, gamma, beta)


# --------------------------------------------------------------------------
# Kernel 5: decode head
#   pooled = (mask @ concat(z2, x5)) * inv_counts          (one MXU pass)
#   zmax   = per-graph max over x5 (post-ReLU, so 0-fill)  (2D slices only)
#   out    = fc3(relu(fc2(relu(fc1([pooled, zmax])))))
# --------------------------------------------------------------------------
def _decode_kernel(mask_ref, batch_ref, inv_ref, zcat_ref, x5_ref,
                   w1a_ref, w1b_ref, b1_ref, w2_ref, b2_ref, w3_ref, b3_ref,
                   o_ref, zmax_sc, *, num_graphs):
    # fused mean pools: single matmul over the (B, N) membership mask
    pooled = jnp.dot(mask_ref[...], zcat_ref[...],
                     preferred_element_type=jnp.float32) * inv_ref[...]  # (B,192)

    # segment max without materializing a (B, N, C) broadcast
    x5 = x5_ref[...]
    batch_ids = batch_ref[...]                                # (N, 1) int32

    def body(b, carry):
        sel = jnp.where(batch_ids == b, x5, 0.0)              # (N, C5)
        zmax_sc[pl.ds(b, 1), :] = jnp.max(sel, axis=0, keepdims=True)
        return carry

    jax.lax.fori_loop(0, num_graphs, body, 0)

    # fc1 with the concat folded into two matmuls (w1 split column-wise)
    h1 = jnp.maximum(
        jnp.dot(pooled, w1a_ref[...], preferred_element_type=jnp.float32)
        + jnp.dot(zmax_sc[...], w1b_ref[...], preferred_element_type=jnp.float32)
        + b1_ref[...], 0.0)
    h2 = jnp.maximum(
        jnp.dot(h1, w2_ref[...], preferred_element_type=jnp.float32)
        + b2_ref[...], 0.0)
    o_ref[...] = jnp.dot(h2, w3_ref[...],
                         preferred_element_type=jnp.float32) + b3_ref[...]


def decode(mask, batch_ids, inv_counts, z2, x5, fc_params, out_channels):
    (w1, b1), (w2, b2), (w3, b3) = fc_params
    num_graphs = mask.shape[0]
    c_mean = z2.shape[1] + x5.shape[1]               # 192
    zcat = jnp.concatenate([z2, x5], axis=1)         # (N, 192) — glue
    w1a, w1b = w1[:c_mean, :], w1[c_mean:, :]        # split fc1 weight — glue
    kern = functools.partial(_decode_kernel, num_graphs=num_graphs)
    return pl.pallas_call(
        kern,
        out_shape=jax.ShapeDtypeStruct((num_graphs, out_channels), jnp.float32),
        in_specs=_vmem_specs(12),
        out_specs=pl.BlockSpec(memory_space=pltpu.MemorySpace.VMEM),
        scratch_shapes=[pltpu.VMEM((num_graphs, x5.shape[1]), jnp.float32)],
        compiler_params=_cparams(),
    )(mask, batch_ids, inv_counts, zcat, x5,
      w1a, w1b, b1.reshape(1, -1), w2, b2.reshape(1, -1), w3, b3.reshape(1, -1))


# --------------------------------------------------------------------------
# Plain-JAX glue
# --------------------------------------------------------------------------
def normalized_adj(edge_index, num_nodes):
    """A_hat = D^-1/2 (A + I) D^-1/2 (PyG GCNConv default normalization).
    Duplicate edges are summed (matches gcn_norm)."""
    src, dst = edge_index[0], edge_index[1]
    a = jnp.zeros((num_nodes, num_nodes), jnp.float32).at[dst, src].add(1.0)
    a = a + jnp.eye(num_nodes, dtype=jnp.float32)
    deg = a.sum(axis=1)
    d_inv_sqrt = jax.lax.rsqrt(deg)
    return a * d_inv_sqrt[:, None] * d_inv_sqrt[None, :]


def init_params(key, in_channels=3, out_channels=5):
    conv_dims = [(in_channels, 64), (64, 128), (128, 256), (256, 128), (128, 64)]
    fc_dims = [(256, 128), (128, 64), (64, out_channels)]
    params = {"conv": [], "fc": []}
    keys = jax.random.split(key, len(conv_dims) + len(fc_dims))
    for i, (cin, cout) in enumerate(conv_dims):
        k1, k2, k3 = jax.random.split(keys[i], 3)
        scale = (6.0 / (cin + cout)) ** 0.5
        w = jax.random.uniform(k1, (cin, cout), jnp.float32, -scale, scale)
        gamma = 1.0 + 0.05 * jax.random.normal(k2, (cout,), jnp.float32)
        beta = 0.05 * jax.random.normal(k3, (cout,), jnp.float32)
        # GCNConv bias omitted: BatchNorm mean-subtraction cancels it exactly.
        params["conv"].append((w, gamma, beta))
    for i, (cin, cout) in enumerate(fc_dims):
        k1, k2 = jax.random.split(keys[len(conv_dims) + i], 2)
        scale = (1.0 / cin) ** 0.5
        w = jax.random.uniform(k1, (cin, cout), jnp.float32, -scale, scale)
        b = jax.random.uniform(k2, (cout,), jnp.float32, -scale, scale)
        params["fc"].append((w, b))
    return params


def gcn_forward(params, x, edge_index, batch, num_graphs, out_channels):
    n = x.shape[0]
    adj = normalized_adj(edge_index, n).astype(jnp.bfloat16)  # reused by all 5 layers

    # ---- encode ----
    h = x
    feats = []
    for (w, gamma, beta) in params["conv"]:
        h = gcn_bn_relu_layer(adj, h, w, gamma, beta)
        # TODO(synk): nn.Dropout is treated as identity (inference semantics);
        # stochastic dropout masks are not reproduced.
        feats.append(h)
    _, x2, _, _, x5 = feats

    # ---- decode ----
    mask = (batch[None, :] == jnp.arange(num_graphs)[:, None]).astype(jnp.float32)
    counts = jnp.maximum(mask.sum(axis=1, keepdims=True), 1.0)
    inv_counts = 1.0 / counts
    batch_ids = batch.astype(jnp.int32).reshape(n, 1)
    return decode(mask, batch_ids, inv_counts, x2, x5, params["fc"], out_channels)


if __name__ == "__main__":
    key = jax.random.PRNGKey(0)
    kp, kx = jax.random.split(key)

    IN_CHANNELS = 3
    OUT_CHANNELS = 5
    NUM_GRAPHS = 2
    NODES_PER_GRAPH = 8
    N = NUM_GRAPHS * NODES_PER_GRAPH  # 16 nodes total

    # node features
    x = jax.random.normal(kx, (N, IN_CHANNELS), jnp.float32)

    # two bidirectional ring graphs of 8 nodes each
    edges = []
    for g in range(NUM_GRAPHS):
        for i in range(NODES_PER_GRAPH):
            a = g * NODES_PER_GRAPH + i
            b = g * NODES_PER_GRAPH + (i + 1) % NODES_PER_GRAPH
            edges.append((a, b))
            edges.append((b, a))
    edge_index = jnp.asarray(edges, dtype=jnp.int32).T          # (2, E)
    batch = jnp.asarray([g for g in range(NUM_GRAPHS)
                         for _ in range(NODES_PER_GRAPH)], jnp.int32)  # (N,)

    params = init_params(kp, IN_CHANNELS, OUT_CHANNELS)

    out = gcn_forward(params, x, edge_index, batch, NUM_GRAPHS, OUT_CHANNELS)
    out = jax.block_until_ready(out)
    assert out.shape == (NUM_GRAPHS, OUT_CHANNELS)
    assert jnp.all(jnp.isfinite(out))
    print("KERNEL_OK")
</pallas_src>

<mosaic_0001>
module attributes {stable_mosaic.version = 11 : i64} {
  func.func @_spmm_kernel(%arg0: i32, %arg1: i32, %arg2: memref<16x16xbf16, #tpu.memory_space<vmem>>, %arg3: memref<16x3xbf16, #tpu.memory_space<vmem>>, %arg4: memref<16x3xf32, #tpu.memory_space<vmem>>, %arg5: memref<16x3xf32, #tpu.memory_space<vmem>>) attributes {dimension_semantics = [#tpu.dimension_semantics<parallel>, #tpu.dimension_semantics<arbitrary>], iteration_bounds = array<i64: 1, 1>, scalar_prefetch = 0 : i64, scratch_operands = 1 : i64, tpu.core_type = #tpu.core_type<tc>, window_params = [{transform_indices = @transform_0, window_bounds = array<i64: 16, 16>}, {transform_indices = @transform_1, window_bounds = array<i64: 16, 3>}, {transform_indices = @transform_2, window_bounds = array<i64: 16, 3>}]} {
    %c0_i32 = arith.constant 0 : i32
    %0 = arith.cmpi eq, %arg1, %c0_i32 : i32
    %1 = arith.extui %0 : i1 to i32
    %c0_i32_0 = arith.constant 0 : i32
    %2 = arith.cmpi ne, %1, %c0_i32_0 : i32
    scf.if %2 {
      %cst_10 = arith.constant 0.000000e+00 : f32
      %12 = vector.broadcast %cst_10 : f32 to vector<16x3xf32>
      %c0_11 = arith.constant 0 : index
      %c0_12 = arith.constant 0 : index
      %13 = vector.load %arg5[%c0_11, %c0_12] : memref<16x3xf32, #tpu.memory_space<vmem>>, vector<16x3xf32>
      tpu.vector_store %arg5[%c0_11, %c0_12], %12 {strides = array<i32>} : memref<16x3xf32, #tpu.memory_space<vmem>>, vector<16x3xf32>,
    } else {
    }
    %c0 = arith.constant 0 : index
    %c0_1 = arith.constant 0 : index
    %3 = vector.load %arg5[%c0, %c0_1] : memref<16x3xf32, #tpu.memory_space<vmem>>, vector<16x3xf32>
    %c0_2 = arith.constant 0 : index
    %c0_3 = arith.constant 0 : index
    %4 = vector.load %arg2[%c0_2, %c0_3] : memref<16x16xbf16, #tpu.memory_space<vmem>>, vector<16x16xbf16>
    %c0_4 = arith.constant 0 : index
    %c0_5 = arith.constant 0 : index
    %5 = vector.load %arg3[%c0_4, %c0_5] : memref<16x3xbf16, #tpu.memory_space<vmem>>, vector<16x3xbf16>
    %cst = arith.constant dense<0.000000e+00> : vector<16x3xf32>
    %6 = tpu.matmul %4, %5, %cst {dimension_numbers = #tpu.dot_dimension_numbers<[1], [0], [0], [1], [0, 0, 1, 1], [], []>} : vector<16x16xbf16>, vector<16x3xbf16>, vector<16x3xf32> -> vector<16x3xf32>
    %7 = arith.addf %3, %6 : vector<16x3xf32>
    %c0_6 = arith.constant 0 : index
    %c0_7 = arith.constant 0 : index
    %8 = vector.load %arg5[%c0_6, %c0_7] : memref<16x3xf32, #tpu.memory_space<vmem>>, vector<16x3xf32>
    tpu.vector_store %arg5[%c0_6, %c0_7], %7 {strides = array<i32>} : memref<16x3xf32, #tpu.memory_space<vmem>>, vector<16x3xf32>,
    %c0_i32_8 = arith.constant 0 : i32
    %9 = arith.cmpi eq, %arg1, %c0_i32_8 : i32
    %10 = arith.extui %9 : i1 to i32
    %c0_i32_9 = arith.constant 0 : i32
    %11 = arith.cmpi ne, %10, %c0_i32_9 : i32
    scf.if %11 {
      %c0_10 = arith.constant 0 : index
      %c0_11 = arith.constant 0 : index
      %12 = vector.load %arg5[%c0_10, %c0_11] : memref<16x3xf32, #tpu.memory_space<vmem>>, vector<16x3xf32>
      %c0_12 = arith.constant 0 : index
      %c0_13 = arith.constant 0 : index
      %13 = vector.load %arg4[%c0_12, %c0_13] : memref<16x3xf32, #tpu.memory_space<vmem>>, vector<16x3xf32>
      tpu.vector_store %arg4[%c0_12, %c0_13], %12 {strides = array<i32>} : memref<16x3xf32, #tpu.memory_space<vmem>>, vector<16x3xf32>,
    } else {
    }
    return
  }
  func.func @transform_0(%arg0: i32, %arg1: i32) -> (i32, i32) {
    %c0_i32 = arith.constant 0 : i32
    return %arg0, %arg1 : i32, i32
  }
  func.func @transform_1(%arg0: i32, %arg1: i32) -> (i32, i32) {
    %c0_i32 = arith.constant 0 : i32
    %c0_i32_0 = arith.constant 0 : i32
    return %arg1, %c0_i32 : i32, i32
  }
  func.func @transform_2(%arg0: i32, %arg1: i32) -> (i32, i32) {
    %c0_i32 = arith.constant 0 : i32
    %c0_i32_0 = arith.constant 0 : i32
    return %arg0, %c0_i32 : i32, i32
  }
}

</mosaic_0001>

<llo_original>
// kernel: tpu_custom_call.1
$region0: #{tpu_custom_call.1}
  #allocation0 [shape = 'u32[]', space=smem, size = 0x4, offset = 0x4, fixed_abs, tag = 'smem constant byte address 0x4 - core index']
  #allocation1 [shape = 'u32[144,128]{1,0:T(1,128)}', space=vmem, size = 0x12000, scoped, tag = 'internal scratch']
  #allocation2 [shape = 'f32[16,3]{1,0:T(8,128)}', space=vmem, size = 0x2000, scoped, tag = 'scratch operand']
  %s0 = inlined_call_operand.vmem [shape: bf16[16,16], index: 0, kind: input, shape index: {}]
  %s1 = inlined_call_operand.vmem [shape: bf16[16,3], index: 1, kind: input, shape index: {}]
  %s2 = inlined_call_operand.vmem [shape: f32[16,3], index: 2, kind: output, shape index: {}]
  %s3 = sld [smem:[#allocation0]]
  $region26: #{tpu_custom_call.1} parent=0
    _
  %s5 = ssub.s32 1, %s3
  %s6 = scalar_select 0, %s5, %s3
  // Predicated region
  $region2: #{tpu_custom_call.1} parent=0 // pred_check
    _
  $region3: #{tpu_custom_call.1} parent=0 // pred_check_branch
    %8 = sbr.rel (0) target = $region5
  $region4: #{tpu_custom_call.1} parent=0 // pred_region
    _
  $region5: #{tpu_custom_call.1} parent=0 // pred_fallthru
    _
  // Predicated region
  $region6: #{tpu_custom_call.1} parent=0 // pred_check
    _
  $region7: #{tpu_custom_call.1} parent=0 // pred_check_branch
    %10 = sbr.rel (0) target = $region9
  $region8: #{tpu_custom_call.1} parent=0 // pred_region
    _
  $region9: #{tpu_custom_call.1} parent=0 // pred_fallthru
    _
  %p12 = scmp.eq.s32.totalorder 0, 0
  // Predicated region
  $region10: #{tpu_custom_call.1} parent=0 // pred_check
    %p13 = pneg %p12
  $region11: #{tpu_custom_call.1} parent=0 // pred_check_branch
    %15 = sbr.rel (%p13) target = $region13
  $region12: #{tpu_custom_call.1} parent=0 // pred_region
    %vm16 = vcmask 23552
    %17 = vst.msk [vmem:[#allocation2] sm:$0xff] %vm16, 0.0
    %18 = vst.msk [vmem:[#allocation2 + $0x8] sm:$0xff] %vm16, 0.0
  $region13: #{tpu_custom_call.1} parent=0 // pred_fallthru
    _
  %v19 = vld [vmem:[#allocation2] sm:$0xff]
  %v20 = vld [vmem:[#allocation2 + $0x8] sm:$0xff]
  %v21 = vld [vmem:[%s0] sm:$0xf]
  %v22 = vld [vmem:[%s0 + $0x4] sm:$0xf]
  %v23 = vld [vmem:[%s1] sm:$0xf]
  %v24 = vld [vmem:[%s1 + $0x4] sm:$0xf]
  %v27 = vunpack.c.l.b16 %v21
  %v28 = vunpack.c.l.b16 %v22
  %v29 = vpack.c.b16 %v28, %v27
  %v32 = vunpack.c.l.b16 %v23
  %v33 = vunpack.c.l.b16 %v24
  %v34 = vpack.c.b16 %v33, %v32
  %vm36 = vcmask 130048
  %v38 = vsel %vm36, %v29, 0
  %40 = vmatprep.subr.bf16.mxu0 0
  %41 = vmatpush1.bf16.msra.mxu0 %v34
  %42 = vmatprep.subr.bf16.mxu0 0
  %43 = vmatpush1.bf16.msra.mxu0 0
  %44 = vmatprep.subr.bf16.mxu0 0
  %45 = vmatpush1.bf16.msra.mxu0 0
  %46 = vmatprep.subr.bf16.mxu0 0
  %47 = vmatpush1.bf16.msra.mxu0 0
  %48 = vmatprep.subr.bf16.mxu0 0
  %49 = vmatpush1.bf16.msra.mxu0 0
  %50 = vmatprep.subr.bf16.mxu0 0
  %51 = vmatpush1.bf16.msra.mxu0 0
  %52 = vmatprep.subr.bf16.mxu0 0
  %53 = vmatpush1.bf16.msra.mxu0 0
  %54 = vmatprep.subr.bf16.mxu0 0
  %55 = vmatpush1.bf16.msra.mxu0 0
  %56 = vmatprep.subr.bf16.mxu0 0
  %57 = vmatpush1.bf16.msra.mxu0 0
  %58 = vmatprep.subr.bf16.mxu0 0
  %59 = vmatpush1.bf16.msra.mxu0 0
  %60 = vmatprep.subr.bf16.mxu0 0
  %61 = vmatpush1.bf16.msra.mxu0 0
  %62 = vmatprep.subr.bf16.mxu0 0
  %63 = vmatpush1.bf16.msra.mxu0 0
  %64 = vmatprep.subr.bf16.mxu0 0
  %65 = vmatpush1.bf16.msra.mxu0 0
  %66 = vmatprep.subr.bf16.mxu0 0
  %67 = vmatpush1.bf16.msra.mxu0 0
  %68 = vmatprep.subr.bf16.mxu0 0
  %69 = vmatpush1.bf16.msra.mxu0 0
  %70 = vmatprep.subr.bf16.mxu0 0
  %71 = vmatpush1.bf16.msra.mxu0 0
  %72 = vmatprep.mubr.bf16.mxu0 0
  %73 = vmatmul.mubr.bf16.gmra.mrb[0].mxu0 %v38
  %v74 = vpop.f32.mrb[0].mxu0
  %v75 = vadd.f32 0.0, %v74
  %v76 = vpop.f32.mrb[0].mxu0
  %v77 = vpop.f32.mrb[0].mxu0
  %v78 = vadd.f32 0.0, %v77
  %v79 = vpop.f32.mrb[0].mxu0
  %80 = vdwg.mxu0
  %v81 = vadd.f32 %v19, %v75
  %v82 = vadd.f32 %v20, %v78
  %vm83 = vcmask 23552
  %84 = vst.msk [vmem:[#allocation2] sm:$0xff] %vm83, %v81
  %85 = vst.msk [vmem:[#allocation2 + $0x8] sm:$0xff] %vm83, %v82
  // Predicated region
  $region14: #{tpu_custom_call.1} parent=0 // pred_check
    %p86 = pneg %p12
  $region15: #{tpu_custom_call.1} parent=0 // pred_check_branch
    %88 = sbr.rel (%p86) target = $region17
  $region16: #{tpu_custom_call.1} parent=0 // pred_region
    %v89 = vld [vmem:[#allocation2] sm:$0xff]
    %v90 = vld [vmem:[#allocation2 + $0x8] sm:$0xff]
    %91 = vst.msk [vmem:[%s2] sm:$0xff] %vm83, %v89
    %92 = vst.msk [vmem:[%s2 + $0x8] sm:$0xff] %vm83, %v90
  $region17: #{tpu_custom_call.1} parent=0 // pred_fallthru
    _
  // Predicated region
  $region18: #{tpu_custom_call.1} parent=0 // pred_check
    _
  $region19: #{tpu_custom_call.1} parent=0 // pred_check_branch
    %94 = sbr.rel (0) target = $region21
  $region20: #{tpu_custom_call.1} parent=0 // pred_region
    _
  $region21: #{tpu_custom_call.1} parent=0 // pred_fallthru
    _
  // Predicated region
  $region22: #{tpu_custom_call.1} parent=0 // pred_check
    _
  $region23: #{tpu_custom_call.1} parent=0 // pred_check_branch
    %96 = sbr.rel (0) target = $region25
  $region24: #{tpu_custom_call.1} parent=0 // pred_region
    _
  $region25: #{tpu_custom_call.1} parent=0 // pred_fallthru
    _

</llo_original>
